<compile_context>
chip_gen: v5e
topology: v5e:2x2
jax: 0.10.0
libtpu: 0.0.40
codegen_flags: <defaults>
</compile_context>

<pallas_src>
import math
from typing import NamedTuple

import jax
import jax.numpy as jnp
from jax.experimental import pallas as pl
from jax.experimental.pallas import tpu as pltpu

_LANE = 128
_SUBLANE = 8
_INV_SQRT2 = 0.7071067811865476


def _round_up(n, m):
    return ((n + m - 1) // m) * m


def _cdiv(a, b):
    return (a + b - 1) // b


def _erf(x):
    # Abramowitz & Stegun 7.1.26, max abs error 1.5e-7.  Uses only exp, an
    # EUP reciprocal, and basic VPU arithmetic (always lowers in Mosaic).
    a1, a2, a3, a4, a5 = (0.254829592, -0.284496736, 1.421413741,
                          -1.453152027, 1.061405429)
    p = 0.3275911
    s = jnp.where(x < 0.0, -1.0, 1.0)
    ax = x * s
    t = pl.reciprocal(1.0 + p * ax, approx=True)          # EUP, not VALU divide
    poly = t * (a1 + t * (a2 + t * (a3 + t * (a4 + t * a5))))
    return s * (1.0 - poly * jnp.exp(-(ax * ax)))


def _geglu_kernel(x_ref, wv_ref, wg_ref, bv_ref, bg_ref, o_ref):
    # x_ref : (tile_m, din_p) bf16
    # wv/wg : (din_p, tile_n) bf16, pre-scaled by 1/sqrt(2)
    # bv/bg : (1, tile_n) f32,      pre-scaled by 1/sqrt(2)
    # o_ref : (tile_m, tile_n) out_dtype
    x = x_ref[...]
    v = jnp.dot(x, wv_ref[...], preferred_element_type=jnp.float32) + bv_ref[...]
    g = jnp.dot(x, wg_ref[...], preferred_element_type=jnp.float32) + bg_ref[...]
    # Because both branches were pre-scaled by 1/sqrt(2):
    #   v * g * (1 + erf(g)) == value * 0.5 * gate * (1 + erf(gate/sqrt(2)))
    o_ref[...] = (v * g * (1.0 + _erf(g))).astype(o_ref.dtype)


class PackedGEGLU(NamedTuple):
    wv: jax.Array     # (din_p, dout_p) bf16
    wg: jax.Array     # (din_p, dout_p) bf16
    bv: jax.Array     # (1, dout_p) f32
    bg: jax.Array     # (1, dout_p) f32
    dim_in: int
    dim_out: int
    din_p: int
    dout_p: int
    tile_n: int


def pack_geglu_params(weight, bias, *, tile_n=512):
    """One-time repack of nn.Linear(dim_in, 2*dim_out) params for the kernel.

    weight: (2*dim_out, dim_in) f32 (PyTorch layout), bias: (2*dim_out,) f32.
    Folds the GELU constants (0.5 and 1/sqrt(2)) into the packed weights and
    biases, pads channels to lane multiples, and casts weights to bf16.
    """
    two_dout, dim_in = weight.shape
    assert two_dout % 2 == 0
    dim_out = two_dout // 2

    din_p = _round_up(max(dim_in, _LANE), _LANE)
    d128 = _round_up(max(dim_out, _LANE), _LANE)
    tile_n = max(_LANE, (int(tile_n) // _LANE) * _LANE)
    n_n = _cdiv(d128, tile_n)
    tile_n = _round_up(_cdiv(d128, n_n), _LANE)
    dout_p = tile_n * n_n

    w = jnp.asarray(weight, jnp.float32) * _INV_SQRT2
    b = jnp.asarray(bias, jnp.float32) * _INV_SQRT2

    wv = jnp.zeros((din_p, dout_p), jnp.float32).at[:dim_in, :dim_out].set(w[:dim_out].T)
    wg = jnp.zeros((din_p, dout_p), jnp.float32).at[:dim_in, :dim_out].set(w[dim_out:].T)
    bv = jnp.zeros((1, dout_p), jnp.float32).at[0, :dim_out].set(b[:dim_out])
    bg = jnp.zeros((1, dout_p), jnp.float32).at[0, :dim_out].set(b[dim_out:])

    return PackedGEGLU(wv.astype(jnp.bfloat16), wg.astype(jnp.bfloat16), bv, bg,
                       dim_in, dim_out, din_p, dout_p, tile_n)


def _pick_row_tiling(m, desired):
    m8 = _round_up(max(m, _SUBLANE), _SUBLANE)
    desired = max(_SUBLANE, (int(desired) // _SUBLANE) * _SUBLANE)
    n_m = max(1, _cdiv(m8, desired))
    # Keep >=2 row tiles when there is enough work so both v7x TCs get a share.
    if n_m == 1 and m8 >= 2 * _SUBLANE:
        n_m = 2
    tile_m = _round_up(_cdiv(m8, n_m), _SUBLANE)
    return tile_m, tile_m * n_m, n_m


def geglu(x, params: PackedGEGLU, *, tile_m=256, out_dtype=jnp.float32):
    """GEGLU forward.  x: (..., dim_in) float; returns (..., dim_out) out_dtype."""
    *lead, dim_in = x.shape
    assert dim_in == params.dim_in
    m = 1
    for d in lead:
        m *= int(d)
    m = max(m, 1)

    tile_m, m_p, n_m = _pick_row_tiling(m, tile_m)
    din_p, dout_p, tile_n = params.din_p, params.dout_p, params.tile_n
    n_n = dout_p // tile_n

    # bf16 activations: cast while the padded copy is materialized anyway.
    x2 = x.reshape(m, dim_in)
    if (m_p, din_p) != (m, dim_in):
        xb = jnp.zeros((m_p, din_p), jnp.bfloat16).at[:m, :dim_in].set(
            x2.astype(jnp.bfloat16))
    else:
        xb = x2.astype(jnp.bfloat16)

    # Grid order: re-stream the smaller operand, keep the larger one resident
    # across the inner axis.  Extra HBM traffic: N-outer re-streams x (n_n-1)
    # times; M-outer re-streams the weights (n_m-1) times.
    x_bytes = m_p * din_p * 2
    w_bytes = 2 * din_p * dout_p * 2
    n_outer = (n_n - 1) * x_bytes <= (n_m - 1) * w_bytes
    # Keep a multi-step axis outermost so megacore has something to split.
    if n_outer and n_n == 1 and n_m > 1:
        n_outer = False
    if (not n_outer) and n_m == 1 and n_n > 1:
        n_outer = True

    if n_outer:
        grid = (n_n, n_m)
        x_map = lambda n, i: (i, 0)
        w_map = lambda n, i: (0, n)
        b_map = lambda n, i: (0, n)
        o_map = lambda n, i: (i, n)
    else:
        grid = (n_m, n_n)
        x_map = lambda i, n: (i, 0)
        w_map = lambda i, n: (0, n)
        b_map = lambda i, n: (0, n)
        o_map = lambda i, n: (i, n)

    # Explicit VMEM budget from the real block footprint (double-buffered
    # blocks + f32 intermediates), clamped so it is safe on v7x (64 MiB phys).
    out_itemsize = jnp.dtype(out_dtype).itemsize
    needed = (2 * (tile_m * din_p * 2           # x block (bf16)
                   + 2 * din_p * tile_n * 2     # wv + wg blocks (bf16)
                   + 2 * tile_n * 4             # bv + bg blocks (f32)
                   + tile_m * tile_n * out_itemsize)
              + 4 * tile_m * tile_n * 4         # v, g, erf temporaries (f32)
              + (4 << 20))
    vmem_limit = int(min(max(needed, 32 << 20), 48 << 20))

    out_p = pl.pallas_call(
        _geglu_kernel,
        out_shape=jax.ShapeDtypeStruct((m_p, dout_p), out_dtype),
        grid=grid,
        in_specs=[
            pl.BlockSpec((tile_m, din_p), x_map),
            pl.BlockSpec((din_p, tile_n), w_map),
            pl.BlockSpec((din_p, tile_n), w_map),
            pl.BlockSpec((1, tile_n), b_map),
            pl.BlockSpec((1, tile_n), b_map),
        ],
        out_specs=pl.BlockSpec((tile_m, tile_n), o_map),
        compiler_params=pltpu.CompilerParams(
            dimension_semantics=("parallel", "parallel"),
            vmem_limit_bytes=vmem_limit),
    )(xb, params.wv, params.wg, params.bv, params.bg)

    out = out_p[:m, :params.dim_out]
    return out.reshape(*lead, params.dim_out)


def reference(x, weight, bias):
    """Pure-JAX mirror of the PyTorch GEGLU forward (f32, exact GELU)."""
    y = jnp.einsum("...i,oi->...o", x, weight) + bias
    value, gate = jnp.split(y, 2, axis=-1)
    return value * jax.nn.gelu(gate, approximate=False)


def init_params(key, dim_in, dim_out):
    """PyTorch-default-style uniform init for nn.Linear(dim_in, 2*dim_out)."""
    kw, kb = jax.random.split(key)
    bound = 1.0 / math.sqrt(dim_in)
    weight = jax.random.uniform(kw, (2 * dim_out, dim_in), jnp.float32, -bound, bound)
    bias = jax.random.uniform(kb, (2 * dim_out,), jnp.float32, -bound, bound)
    return weight, bias


if __name__ == "__main__":
    key = jax.random.PRNGKey(0)
    k1, k2, k3, k4 = jax.random.split(key, 4)

    # Case 1: lane-aligned shapes (2 row tiles -> both v7x cores busy).
    B, N, dim_in, dim_out = 2, 128, 128, 128
    x = jax.random.normal(k1, (B, N, dim_in), jnp.float32)
    weight, bias = init_params(k2, dim_in, dim_out)
    packed = pack_geglu_params(weight, bias)          # hoisted / cached repack
    out = geglu(x, packed)
    jax.block_until_ready(out)
    ref = reference(x, weight, bias)
    err = float(jnp.max(jnp.abs(out - ref)))
    assert out.shape == (B, N, dim_out) and out.dtype == jnp.float32
    # bf16 MXU operands with f32 accumulation -> tolerance loosened vs pure f32.
    assert jnp.allclose(out, ref, rtol=2e-2, atol=2e-2), f"max abs err {err}"

    # Case 2: small, unaligned shapes (exercises lane/row padding + ragged tiles).
    B2, N2, din2, dout2 = 2, 10, 48, 40
    x_s = jax.random.normal(k3, (B2, N2, din2), jnp.float32)
    w_s, b_s = init_params(k4, din2, dout2)
    packed_s = pack_geglu_params(w_s, b_s)
    out_s = geglu(x_s, packed_s)
    jax.block_until_ready(out_s)
    ref_s = reference(x_s, w_s, b_s)
    err_s = float(jnp.max(jnp.abs(out_s - ref_s)))
    assert out_s.shape == (B2, N2, dout2) and out_s.dtype == jnp.float32
    assert jnp.allclose(out_s, ref_s, rtol=2e-2, atol=2e-2), f"max abs err {err_s}"

    print("KERNEL_OK")
</pallas_src>

<mosaic_0001>
module attributes {stable_mosaic.version = 11 : i64} {
  func.func @_geglu_kernel(%arg0: i32, %arg1: i32, %arg2: memref<128x128xbf16, #tpu.memory_space<vmem>>, %arg3: memref<128x128xbf16, #tpu.memory_space<vmem>>, %arg4: memref<128x128xbf16, #tpu.memory_space<vmem>>, %arg5: memref<1x128xf32, #tpu.memory_space<vmem>>, %arg6: memref<1x128xf32, #tpu.memory_space<vmem>>, %arg7: memref<128x128xf32, #tpu.memory_space<vmem>>) attributes {dimension_semantics = [#tpu.dimension_semantics<parallel>, #tpu.dimension_semantics<parallel>], iteration_bounds = array<i64: 2, 1>, scalar_prefetch = 0 : i64, scratch_operands = 0 : i64, tpu.core_type = #tpu.core_type<tc>, window_params = [{transform_indices = @transform_0, window_bounds = array<i64: 128, 128>}, {transform_indices = @transform_1, window_bounds = array<i64: 128, 128>}, {transform_indices = @transform_2, window_bounds = array<i64: 128, 128>}, {transform_indices = @transform_3, window_bounds = array<i64: 1, 128>}, {transform_indices = @transform_4, window_bounds = array<i64: 1, 128>}, {transform_indices = @transform_5, window_bounds = array<i64: 128, 128>}]} {
    %c0 = arith.constant 0 : index
    %c0_0 = arith.constant 0 : index
    %0 = vector.load %arg2[%c0, %c0_0] : memref<128x128xbf16, #tpu.memory_space<vmem>>, vector<128x128xbf16>
    %c0_1 = arith.constant 0 : index
    %c0_2 = arith.constant 0 : index
    %1 = vector.load %arg3[%c0_1, %c0_2] : memref<128x128xbf16, #tpu.memory_space<vmem>>, vector<128x128xbf16>
    %cst = arith.constant dense<0.000000e+00> : vector<128x128xf32>
    %2 = tpu.matmul %0, %1, %cst {dimension_numbers = #tpu.dot_dimension_numbers<[1], [0], [0], [1], [0, 0, 1, 1], [], []>} : vector<128x128xbf16>, vector<128x128xbf16>, vector<128x128xf32> -> vector<128x128xf32>
    %c0_3 = arith.constant 0 : index
    %c0_4 = arith.constant 0 : index
    %3 = vector.load %arg5[%c0_3, %c0_4] : memref<1x128xf32, #tpu.memory_space<vmem>>, vector<1x128xf32>
    %4 = vector.broadcast %3 : vector<1x128xf32> to vector<128x128xf32>
    %5 = arith.addf %2, %4 : vector<128x128xf32>
    %c0_5 = arith.constant 0 : index
    %c0_6 = arith.constant 0 : index
    %6 = vector.load %arg4[%c0_5, %c0_6] : memref<128x128xbf16, #tpu.memory_space<vmem>>, vector<128x128xbf16>
    %cst_7 = arith.constant dense<0.000000e+00> : vector<128x128xf32>
    %7 = tpu.matmul %0, %6, %cst_7 {dimension_numbers = #tpu.dot_dimension_numbers<[1], [0], [0], [1], [0, 0, 1, 1], [], []>} : vector<128x128xbf16>, vector<128x128xbf16>, vector<128x128xf32> -> vector<128x128xf32>
    %c0_8 = arith.constant 0 : index
    %c0_9 = arith.constant 0 : index
    %8 = vector.load %arg6[%c0_8, %c0_9] : memref<1x128xf32, #tpu.memory_space<vmem>>, vector<1x128xf32>
    %9 = vector.broadcast %8 : vector<1x128xf32> to vector<128x128xf32>
    %10 = arith.addf %7, %9 : vector<128x128xf32>
    %11 = arith.mulf %5, %10 : vector<128x128xf32>
    %cst_10 = arith.constant 0.000000e+00 : f32
    %12 = vector.broadcast %cst_10 : f32 to vector<128x128xf32>
    %13 = arith.cmpf olt, %10, %12 : vector<128x128xf32>
    %cst_11 = arith.constant -1.000000e+00 : f32
    %cst_12 = arith.constant 1.000000e+00 : f32
    %14 = vector.broadcast %cst_11 : f32 to vector<128x128xf32>
    %15 = vector.broadcast %cst_12 : f32 to vector<128x128xf32>
    %16 = arith.select %13, %14, %15 : vector<128x128xi1>, vector<128x128xf32>
    %17 = arith.mulf %10, %16 : vector<128x128xf32>
    %cst_13 = arith.constant 0.327591091 : f32
    %18 = vector.broadcast %cst_13 : f32 to vector<128x128xf32>
    %19 = arith.mulf %18, %17 : vector<128x128xf32>
    %cst_14 = arith.constant 1.000000e+00 : f32
    %20 = vector.broadcast %cst_14 : f32 to vector<128x128xf32>
    %21 = arith.addf %20, %19 : vector<128x128xf32>
    %22 = tpu.reciprocal %21 {approx = true} : vector<128x128xf32> -> vector<128x128xf32>
    %cst_15 = arith.constant 1.06140542 : f32
    %23 = vector.broadcast %cst_15 : f32 to vector<128x128xf32>
    %24 = arith.mulf %22, %23 : vector<128x128xf32>
    %cst_16 = arith.constant -1.45315206 : f32
    %25 = vector.broadcast %cst_16 : f32 to vector<128x128xf32>
    %26 = arith.addf %25, %24 : vector<128x128xf32>
    %27 = arith.mulf %22, %26 : vector<128x128xf32>
    %cst_17 = arith.constant 1.42141378 : f32
    %28 = vector.broadcast %cst_17 : f32 to vector<128x128xf32>
    %29 = arith.addf %28, %27 : vector<128x128xf32>
    %30 = arith.mulf %22, %29 : vector<128x128xf32>
    %cst_18 = arith.constant -0.284496725 : f32
    %31 = vector.broadcast %cst_18 : f32 to vector<128x128xf32>
    %32 = arith.addf %31, %30 : vector<128x128xf32>
    %33 = arith.mulf %22, %32 : vector<128x128xf32>
    %cst_19 = arith.constant 0.254829586 : f32
    %34 = vector.broadcast %cst_19 : f32 to vector<128x128xf32>
    %35 = arith.addf %34, %33 : vector<128x128xf32>
    %36 = arith.mulf %22, %35 : vector<128x128xf32>
    %37 = arith.mulf %17, %17 : vector<128x128xf32>
    %cst_20 = arith.constant 0.000000e+00 : f32
    %38 = vector.broadcast %cst_20 : f32 to vector<128x128xf32>
    %39 = arith.subf %38, %37 : vector<128x128xf32>
    %40 = math.exp %39 : vector<128x128xf32>
    %41 = arith.mulf %36, %40 : vector<128x128xf32>
    %cst_21 = arith.constant 1.000000e+00 : f32
    %42 = vector.broadcast %cst_21 : f32 to vector<128x128xf32>
    %43 = arith.subf %42, %41 : vector<128x128xf32>
    %44 = arith.mulf %16, %43 : vector<128x128xf32>
    %cst_22 = arith.constant 1.000000e+00 : f32
    %45 = vector.broadcast %cst_22 : f32 to vector<128x128xf32>
    %46 = arith.addf %45, %44 : vector<128x128xf32>
    %47 = arith.mulf %11, %46 : vector<128x128xf32>
    %c0_23 = arith.constant 0 : index
    %c0_24 = arith.constant 0 : index
    %48 = vector.load %arg7[%c0_23, %c0_24] : memref<128x128xf32, #tpu.memory_space<vmem>>, vector<128x128xf32>
    tpu.vector_store %arg7[%c0_23, %c0_24], %47 {strides = array<i32>} : memref<128x128xf32, #tpu.memory_space<vmem>>, vector<128x128xf32>,
    return
  }
  func.func @transform_0(%arg0: i32, %arg1: i32) -> (i32, i32) {
    %c0_i32 = arith.constant 0 : i32
    %c0_i32_0 = arith.constant 0 : i32
    return %arg0, %c0_i32 : i32, i32
  }
  func.func @transform_1(%arg0: i32, %arg1: i32) -> (i32, i32) {
    %c0_i32 = arith.constant 0 : i32
    %c0_i32_0 = arith.constant 0 : i32
    return %c0_i32, %arg1 : i32, i32
  }
  func.func @transform_2(%arg0: i32, %arg1: i32) -> (i32, i32) {
    %c0_i32 = arith.constant 0 : i32
    %c0_i32_0 = arith.constant 0 : i32
    return %c0_i32, %arg1 : i32, i32
  }
  func.func @transform_3(%arg0: i32, %arg1: i32) -> (i32, i32) {
    %c0_i32 = arith.constant 0 : i32
    %c0_i32_0 = arith.constant 0 : i32
    return %c0_i32, %arg1 : i32, i32
  }
  func.func @transform_4(%arg0: i32, %arg1: i32) -> (i32, i32) {
    %c0_i32 = arith.constant 0 : i32
    %c0_i32_0 = arith.constant 0 : i32
    return %c0_i32, %arg1 : i32, i32
  }
  func.func @transform_5(%arg0: i32, %arg1: i32) -> (i32, i32) {
    %c0_i32 = arith.constant 0 : i32
    return %arg0, %arg1 : i32, i32
  }
}

</mosaic_0001>

<llo_original>
// kernel: tpu_custom_call.1
$region0: #{tpu_custom_call.1}
  #allocation0 [shape = 'u32[]', space=smem, size = 0x4, offset = 0x4, fixed_abs, tag = 'smem constant byte address 0x4 - core index']
  #allocation1 [shape = 'u32[72,128]{1,0:T(1,128)}', space=vmem, size = 0x9000, scoped, tag = 'internal scratch']
  %s0 = inlined_call_operand.hbm [shape: bf16[256,128], index: 0, kind: input, shape index: {}]
  %s1 = inlined_call_operand.hbm [shape: bf16[128,128], index: 1, kind: input, shape index: {}]
  %s2 = inlined_call_operand.hbm [shape: bf16[128,128], index: 2, kind: input, shape index: {}]
  %s3 = inlined_call_operand.vmem [shape: f32[1,128], index: 3, kind: input, shape index: {}]
  %s4 = inlined_call_operand.vmem [shape: f32[1,128], index: 4, kind: input, shape index: {}]
  %s5 = inlined_call_operand.hbm [shape: f32[256,128], index: 5, kind: output, shape index: {}]
  %s6 = sld [smem:[#allocation0]]
  $region65: #{tpu_custom_call.1} parent=0
    _
  %s8 = ssub.s32 1, %s6
  %s9 = scalar_select 0, %s8, %s6
  $region1: #{tpu_custom_call.1} parent=0
    #allocation2 [shape = 'u8[65536]{0}', space=vmem, size = 0x10000, scoped, tag = 'input window, operand 0']
    #allocation3 [shape = 's32[2]{0}', space=sflag, size = 0x8, scoped, tag = 'scoped memory for tpu_custom_call.1']
    #allocation4 [shape = 's32[2]{0}', space=sflag, size = 0x8, scoped, tag = 'scoped memory for tpu_custom_call.1']
    #allocation5 [shape = 'u8[32768]{0}', space=vmem, size = 0x8000, scoped, tag = 'input window, operand 1, single buffered']
    #allocation6 [shape = 's32[1]{0}', space=sflag, size = 0x4, scoped, tag = 'scoped memory for tpu_custom_call.1']
    #allocation7 [shape = 'u8[32768]{0}', space=vmem, size = 0x8000, scoped, tag = 'input window, operand 2, single buffered']
    #allocation8 [shape = 'u8[131072]{0}', space=vmem, size = 0x20000, scoped, tag = 'output window, operand 0']
    %10 = vsyncpa [#allocation3], 0
    %s11 = scalar_lea.sflag [#allocation3], 1
    %12 = vsyncpa %s11, 0
    %13 = vsyncpa [#allocation6], 0
    %14 = vsyncpa [#allocation4], 0
    %s15 = scalar_lea.sflag [#allocation4], 1
    %16 = vsyncpa %s15, 0
    loop: start=0, step=1, limit=4
    $region2: #{tpu_custom_call.1} parent=1 // loop_pre_header
      _
    $region3: #{tpu_custom_call.1} parent=1 // loop_header
      %s18 = sphi 0, %s22
      %p19 = scmp.ge.s32.totalorder %s18, 4
      %s25 = sphi 0, %s37
      %s26 = sphi 0, %s33
      %s27 = sphi 0, %s25
      %s28 = sphi 0, %s26
      %s29 = sphi 0, %s27
      %s30 = sphi 0, %s28
      %s40 = sphi 0, %s42
      %s43 = sphi 0, %s40
      %s44 = sphi 0, %s43
      %s60 = sphi 0, %s44
      %s66 = sphi 0, %s68
      %s69 = sphi 0, %s66
      %s70 = sphi 0, %s69
      %s86 = sphi 0, %s70
      %s92 = sphi 0, %s94
      %s95 = sphi 0, %s92
      %s96 = sphi 0, %s95
      %s112 = sphi 0, %s96
      %s118 = sphi 0, %s120
      %s121 = sphi 0, %s118
      %s122 = sphi 0, %s121
      %s138 = sphi 0, %s122
      %s144 = sphi 0, %s146
      %s147 = sphi 0, %s144
      %s148 = sphi 0, %s147
      %s164 = sphi 0, %s148
      %s172 = sphi 0, %s174
      %s175 = sphi 0, %s172
      %s176 = sphi 0, %s175
      %s192 = sphi 0, %s176
    $region4: #{tpu_custom_call.1} parent=1 // loop_header_branch
      %21 = sbr.rel (%p19) target = $region8
    $region5: #{tpu_custom_call.1} parent=1 // loop_body
      %s23 = ssub.s32 %s18, 1
      %s24 = ssub.s32 %s18, 2
      %s31 = sadd.s32 1, %s26
      %p32 = scmp.ge.s32.totalorder %s31, 1
      %s33 = scalar_select %p32, 0, %s31
      %s34 = sadd.s32 1, %s25
      %s35 = scalar_select %p32, %s34, %s25
      %p36 = scmp.ge.s32.totalorder %s35, 2
      %s37 = scalar_select %p36, 0, %s35
      %s38 = ssub.s32 %s25, %s37
      %p39 = scmp.eq.s32.totalorder %s38, 0
      %s41 = sadd.s32 %s40, 1
      %s42 = scalar_select %p39, %s40, %s41
      %p45 = pneg %p39
      %p46 = scmp.eq.s32.totalorder %s18, 1
      %p47 = por %p45, %p46
      %p48 = scmp.ne.s32.totalorder %s40, %s43
      %p49 = scmp.eq.s32.totalorder %s18, 0
      %p50 = por %p48, %p49
      %p51 = scmp.ne.s32.totalorder %s40, %s43
      %p52 = scmp.eq.s32.totalorder %s23, 1
      %p53 = por %p51, %p52
      %p54 = scmp.ne.s32.totalorder %s43, %s44
      %p55 = scmp.eq.s32.totalorder %s23, 0
      %p56 = por %p54, %p55
      %p57 = scmp.ne.s32.totalorder %s43, %s44
      %p58 = scmp.eq.s32.totalorder %s24, 1
      %p59 = por %p57, %p58
      %p61 = scmp.ne.s32.totalorder %s44, %s60
      %p62 = scmp.eq.s32.totalorder %s24, 0
      %p63 = por %p61, %p62
      %s64 = ssub.s32 %s26, %s33
      %p65 = scmp.eq.s32.totalorder %s64, 0
      %s67 = sadd.s32 %s66, 1
      %s68 = scalar_select %p65, %s66, %s67
      %p71 = pneg %p65
      %p72 = scmp.eq.s32.totalorder %s18, 1
      %p73 = por %p71, %p72
      %p74 = scmp.ne.s32.totalorder %s66, %s69
      %p75 = scmp.eq.s32.totalorder %s18, 0
      %p76 = por %p74, %p75
      %p77 = scmp.ne.s32.totalorder %s66, %s69
      %p78 = scmp.eq.s32.totalorder %s23, 1
      %p79 = por %p77, %p78
      %p80 = scmp.ne.s32.totalorder %s69, %s70
      %p81 = scmp.eq.s32.totalorder %s23, 0
      %p82 = por %p80, %p81
      %p83 = scmp.ne.s32.totalorder %s69, %s70
      %p84 = scmp.eq.s32.totalorder %s24, 1
      %p85 = por %p83, %p84
      %p87 = scmp.ne.s32.totalorder %s70, %s86
      %p88 = scmp.eq.s32.totalorder %s24, 0
      %p89 = por %p87, %p88
      %s90 = ssub.s32 %s26, %s33
      %p91 = scmp.eq.s32.totalorder %s90, 0
      %s93 = sadd.s32 %s92, 1
      %s94 = scalar_select %p91, %s92, %s93
      %p97 = pneg %p91
      %p98 = scmp.eq.s32.totalorder %s18, 1
      %p99 = por %p97, %p98
      %p100 = scmp.ne.s32.totalorder %s92, %s95
      %p101 = scmp.eq.s32.totalorder %s18, 0
      %p102 = por %p100, %p101
      %p103 = scmp.ne.s32.totalorder %s92, %s95
      %p104 = scmp.eq.s32.totalorder %s23, 1
      %p105 = por %p103, %p104
      %p106 = scmp.ne.s32.totalorder %s95, %s96
      %p107 = scmp.eq.s32.totalorder %s23, 0
      %p108 = por %p106, %p107
      %p109 = scmp.ne.s32.totalorder %s95, %s96
      %p110 = scmp.eq.s32.totalorder %s24, 1
      %p111 = por %p109, %p110
      %p113 = scmp.ne.s32.totalorder %s96, %s112
      %p114 = scmp.eq.s32.totalorder %s24, 0
      %p115 = por %p113, %p114
      %s116 = ssub.s32 %s26, %s33
      %p117 = scmp.eq.s32.totalorder %s116, 0
      %s119 = sadd.s32 %s118, 1
      %s120 = scalar_select %p117, %s118, %s119
      %p123 = pneg %p117
      %p124 = scmp.eq.s32.totalorder %s18, 1
      %p125 = por %p123, %p124
      %p126 = scmp.ne.s32.totalorder %s118, %s121
      %p127 = scmp.eq.s32.totalorder %s18, 0
      %p128 = por %p126, %p127
      %p129 = scmp.ne.s32.totalorder %s118, %s121
      %p130 = scmp.eq.s32.totalorder %s23, 1
      %p131 = por %p129, %p130
      %p132 = scmp.ne.s32.totalorder %s121, %s122
      %p133 = scmp.eq.s32.totalorder %s23, 0
      %p134 = por %p132, %p133
      %p135 = scmp.ne.s32.totalorder %s121, %s122
      %p136 = scmp.eq.s32.totalorder %s24, 1
      %p137 = por %p135, %p136
      %p139 = scmp.ne.s32.totalorder %s122, %s138
      %p140 = scmp.eq.s32.totalorder %s24, 0
      %p141 = por %p139, %p140
      %s142 = ssub.s32 %s26, %s33
      %p143 = scmp.eq.s32.totalorder %s142, 0
      %s145 = sadd.s32 %s144, 1
      %s146 = scalar_select %p143, %s144, %s145
      %p149 = pneg %p143
      %p150 = scmp.eq.s32.totalorder %s18, 1
      %p151 = por %p149, %p150
      %p152 = scmp.ne.s32.totalorder %s144, %s147
      %p153 = scmp.eq.s32.totalorder %s18, 0
      %p154 = por %p152, %p153
      %p155 = scmp.ne.s32.totalorder %s144, %s147
      %p156 = scmp.eq.s32.totalorder %s23, 1
      %p157 = por %p155, %p156
      %p158 = scmp.ne.s32.totalorder %s147, %s148
      %p159 = scmp.eq.s32.totalorder %s23, 0
      %p160 = por %p158, %p159
      %p161 = scmp.ne.s32.totalorder %s147, %s148
      %p162 = scmp.eq.s32.totalorder %s24, 1
      %p163 = por %p161, %p162
      %p165 = scmp.ne.s32.totalorder %s148, %s164
      %p166 = scmp.eq.s32.totalorder %s24, 0
      %p167 = por %p165, %p166
      %s168 = ssub.s32 %s25, %s37
      %s169 = ssub.s32 %s26, %s33
      %s170 = sor.u32 %s168, %s169
      %p171 = scmp.eq.s32.totalorder %s170, 0
      %s173 = sadd.s32 %s172, 1
      %s174 = scalar_select %p171, %s172, %s173
      %p177 = pneg %p171
      %p178 = scmp.eq.s32.totalorder %s18, 1
      %p179 = por %p177, %p178
      %p180 = scmp.ne.s32.totalorder %s172, %s175
      %p181 = scmp.eq.s32.totalorder %s18, 0
      %p182 = por %p180, %p181
      %p183 = scmp.ne.s32.totalorder %s172, %s175
      %p184 = scmp.eq.s32.totalorder %s23, 1
      %p185 = por %p183, %p184
      %p186 = scmp.ne.s32.totalorder %s175, %s176
      %p187 = scmp.eq.s32.totalorder %s23, 0
      %p188 = por %p186, %p187
      %p189 = scmp.ne.s32.totalorder %s175, %s176
      %p190 = scmp.eq.s32.totalorder %s24, 1
      %p191 = por %p189, %p190
      %p193 = scmp.ne.s32.totalorder %s176, %s192
      %p194 = scmp.eq.s32.totalorder %s24, 0
      %p195 = por %p193, %p194
      %p196 = scmp.le.s32.totalorder 1, %s18
      %p197 = scmp.lt.s32.totalorder %s18, 3
      %p198 = pnand %p196, %p197
      %p199 = pneg %p198
      // Predicated region
      $region9: #{tpu_custom_call.1} parent=5 // pred_check
        _
      $region10: #{tpu_custom_call.1} parent=5 // pred_check_branch
        %201 = sbr.rel (%p198) target = $region12
      $region11: #{tpu_custom_call.1} parent=5 // pred_region
        %s202 = ssub.s32 %s18, 1
        // Predicated region
        $region13: #{tpu_custom_call.1} parent=11 // pred_check
          %p203 = pneg %p82
        $region14: #{tpu_custom_call.1} parent=11 // pred_check_branch
          %205 = sbr.rel (%p203) target = $region16
        $region15: #{tpu_custom_call.1} parent=11 // pred_region
          %207 = vsyncadd [#allocation6], 0
          %s208 = smul.addr %s28, 4
          %s209 = scalar_lea.hbm %s1, %s208
          %s210 = sshll.u32 %s209, 4
          %s211 = int_to_ptr.hbm [resolvable:$true] %s210
          %s212 = sshll.u32 [#allocation5], 4
          %s213 = int_to_ptr.vmem [resolvable:$true] %s212
          %218 = dma.hbm_to_vmem [thread:$0]  %s211, 1024, %s213, [#allocation6], 64, 64, 4
        $region16: #{tpu_custom_call.1} parent=11 // pred_fallthru
          _
        // Predicated region
        $region17: #{tpu_custom_call.1} parent=11 // pred_check
          %p219 = pneg %p108
        $region18: #{tpu_custom_call.1} parent=11 // pred_check_branch
          %221 = sbr.rel (%p219) target = $region20
        $region19: #{tpu_custom_call.1} parent=11 // pred_region
          %223 = vsyncadd [#allocation6], 0
          %s224 = smul.addr %s28, 4
          %s225 = scalar_lea.hbm %s2, %s224
          %s226 = sshll.u32 %s225, 4
          %s227 = int_to_ptr.hbm [resolvable:$true] %s226
          %s228 = sshll.u32 [#allocation7], 4
          %s229 = int_to_ptr.vmem [resolvable:$true] %s228
          %234 = dma.hbm_to_vmem [thread:$0]  %s227, 1024, %s229, [#allocation6], 64, 64, 4
        $region20: #{tpu_custom_call.1} parent=11 // pred_fallthru
          _
        // Predicated region
        $region21: #{tpu_custom_call.1} parent=11 // pred_check
          %p235 = pneg %p134
        $region22: #{tpu_custom_call.1} parent=11 // pred_check_branch
          %237 = sbr.rel (%p235) target = $region24
        $region23: #{tpu_custom_call.1} parent=11 // pred_region
          %p238 = scmp.lt.s32.totalorder %s28, 0
          %s239 = scalar_select %p238, %s28, 0
          %s240 = scalar_lea.vmem %s3, %s239
        $region24: #{tpu_custom_call.1} parent=11 // pred_fallthru
          _
        // Predicated region
        $region25: #{tpu_custom_call.1} parent=11 // pred_check
          %p241 = pneg %p160
        $region26: #{tpu_custom_call.1} parent=11 // pred_check_branch
          %243 = sbr.rel (%p241) target = $region28
        $region27: #{tpu_custom_call.1} parent=11 // pred_region
          %p244 = scmp.lt.s32.totalorder %s28, 0
          %s245 = scalar_select %p244, %s28, 0
          %s246 = scalar_lea.vmem %s4, %s245
        $region28: #{tpu_custom_call.1} parent=11 // pred_fallthru
          _
      $region12: #{tpu_custom_call.1} parent=5 // pred_fallthru
        _
      %p247 = scmp.lt.s32.totalorder %s18, 2
      // Predicated region
      $region29: #{tpu_custom_call.1} parent=5 // pred_check
        %p248 = pneg %p247
      $region30: #{tpu_custom_call.1} parent=5 // pred_check_branch
        %250 = sbr.rel (%p248) target = $region32
      $region31: #{tpu_custom_call.1} parent=5 // pred_region
        // Predicated region
        $region33: #{tpu_custom_call.1} parent=31 // pred_check
          %p251 = pneg %p50
        $region34: #{tpu_custom_call.1} parent=31 // pred_check_branch
          %253 = sbr.rel (%p251) target = $region36
        $region35: #{tpu_custom_call.1} parent=31 // pred_region
          %s254 = sand.u32 %s40, 1
          %s255 = scalar_lea.sflag [#allocation3], %s254
          %s256 = sand.u32 %s40, 1
          %s257 = smul.addr %s256, 64
          %s258 = scalar_lea.vmem [#allocation2], %s257
          %s259 = smul.u32 16, %s25
          %261 = vsyncadd %s255, 0
          %s262 = smul.addr %s259, 4
          %s263 = scalar_lea.hbm %s0, %s262
          %s264 = sshll.u32 %s263, 4
          %s265 = int_to_ptr.hbm [resolvable:$true] %s264
          %s266 = sshll.u32 %s258, 4
          %s267 = int_to_ptr.vmem [resolvable:$true] %s266
          %272 = dma.hbm_to_vmem [thread:$0]  %s265, 1024, %s267, %s255, 64, 64, 4
        $region36: #{tpu_custom_call.1} parent=31 // pred_fallthru
          _
      $region32: #{tpu_custom_call.1} parent=5 // pred_fallthru
        _
      %p273 = scmp.le.s32.totalorder 1, %s18
      %p274 = scmp.lt.s32.totalorder %s18, 3
      %p275 = pnand %p273, %p274
      %p276 = pneg %p275
      // Predicated region
      $region37: #{tpu_custom_call.1} parent=5 // pred_check
        _
      $region38: #{tpu_custom_call.1} parent=5 // pred_check_branch
        %278 = sbr.rel (%p275) target = $region40
      $region39: #{tpu_custom_call.1} parent=5 // pred_region
        %s279 = ssub.s32 %s18, 1
        %s280 = sand.u32 %s43, 1
        %s281 = scalar_lea.sflag [#allocation3], %s280
        %s282 = sand.u32 %s43, 1
        %s283 = smul.addr %s282, 64
        %s284 = scalar_lea.vmem [#allocation2], %s283
        // Predicated region
        $region41: #{tpu_custom_call.1} parent=39 // pred_check
          %p285 = pneg %p56
        $region42: #{tpu_custom_call.1} parent=39 // pred_check_branch
          %287 = sbr.rel (%p285) target = $region44
        $region43: #{tpu_custom_call.1} parent=39 // pred_region
          %289 = dma.done %s281, 1024
        $region44: #{tpu_custom_call.1} parent=39 // pred_fallthru
          _
        // Predicated region
        $region45: #{tpu_custom_call.1} parent=39 // pred_check
          %p290 = pneg %p82
        $region46: #{tpu_custom_call.1} parent=39 // pred_check_branch
          %292 = sbr.rel (%p290) target = $region48
        $region47: #{tpu_custom_call.1} parent=39 // pred_region
          %294 = dma.done [#allocation6], 1024
        $region48: #{tpu_custom_call.1} parent=39 // pred_fallthru
          _
        // Predicated region
        $region49: #{tpu_custom_call.1} parent=39 // pred_check
          %p295 = pneg %p108
        $region50: #{tpu_custom_call.1} parent=39 // pred_check_branch
          %297 = sbr.rel (%p295) target = $region52
        $region51: #{tpu_custom_call.1} parent=39 // pred_region
          %299 = dma.done [#allocation6], 1024
        $region52: #{tpu_custom_call.1} parent=39 // pred_fallthru
          _
        %s300 = sand.u32 %s43, 1
        %s301 = scalar_lea.sflag [#allocation3], %s300
        %s302 = sand.u32 %s43, 1
        %s303 = smul.addr %s302, 64
        %s304 = scalar_lea.vmem [#allocation2], %s303
        %p305 = pneg %p56
        %p306 = pneg %p53
        %p307 = pneg %p82
        %p308 = pneg %p79
        %p309 = pneg %p108
        %p310 = pneg %p105
        %p311 = scmp.lt.s32.totalorder %s28, 0
        %s312 = scalar_select %p311, %s28, 0
        %s313 = scalar_lea.vmem %s3, %s312
        %p314 = pneg %p134
        %p315 = pneg %p131
        %p316 = scmp.lt.s32.totalorder %s28, 0
        %s317 = scalar_select %p316, %s28, 0
        %s318 = scalar_lea.vmem %s4, %s317
        %p319 = pneg %p160
        %p320 = pneg %p157
        %p321 = pneg %p188
        %p322 = pneg %p185
        %s323 = sand.u32 %s175, 1
        %s324 = scalar_lea.sflag [#allocation4], %s323
        %s325 = sand.u32 %s175, 1
        %s326 = smul.addr %s325, 128
        %s327 = scalar_lea.vmem [#allocation8], %s326
        %s328 = smul.u32 16, %s27
        %p329 = scmp.lt.s32.totalorder %s28, 0
        %s330 = scalar_select %p329, %s28, 0
        %s331 = scalar_lea.vmem %s3, %s330
        %p332 = scmp.lt.s32.totalorder %s28, 0
        %s333 = scalar_select %p332, %s28, 0
        %s334 = scalar_lea.vmem %s4, %s333
        %s335 = smul.u32 16, %s27
        %v336 = vld [vmem:[%s284] sm:$0xf]
        %v337 = vld [vmem:[%s284 + $0x4] sm:$0xf]
        %v338 = vld [vmem:[%s284 + $0x8] sm:$0xf]
        %v339 = vld [vmem:[%s284 + $0xc] sm:$0xf]
        %v340 = vld [vmem:[%s284 + $0x10] sm:$0xf]
        %v341 = vld [vmem:[%s284 + $0x14] sm:$0xf]
        %v342 = vld [vmem:[%s284 + $0x18] sm:$0xf]
        %v343 = vld [vmem:[%s284 + $0x1c] sm:$0xf]
        %v344 = vld [vmem:[%s284 + $0x20] sm:$0xf]
        %v345 = vld [vmem:[%s284 + $0x24] sm:$0xf]
        %v346 = vld [vmem:[%s284 + $0x28] sm:$0xf]
        %v347 = vld [vmem:[%s284 + $0x2c] sm:$0xf]
        %v348 = vld [vmem:[%s284 + $0x30] sm:$0xf]
        %v349 = vld [vmem:[%s284 + $0x34] sm:$0xf]
        %v350 = vld [vmem:[%s284 + $0x38] sm:$0xf]
        %v351 = vld [vmem:[%s284 + $0x3c] sm:$0xf]
        %v352 = vld [vmem:[#allocation5] sm:$0xf]
        %v353 = vld [vmem:[#allocation5 + $0x4] sm:$0xf]
        %v354 = vld [vmem:[#allocation5 + $0x8] sm:$0xf]
        %v355 = vld [vmem:[#allocation5 + $0xc] sm:$0xf]
        %v356 = vld [vmem:[#allocation5 + $0x10] sm:$0xf]
        %v357 = vld [vmem:[#allocation5 + $0x14] sm:$0xf]
        %v358 = vld [vmem:[#allocation5 + $0x18] sm:$0xf]
        %v359 = vld [vmem:[#allocation5 + $0x1c] sm:$0xf]
        %v360 = vld [vmem:[#allocation5 + $0x20] sm:$0xf]
        %v361 = vld [vmem:[#allocation5 + $0x24] sm:$0xf]
        %v362 = vld [vmem:[#allocation5 + $0x28] sm:$0xf]
        %v363 = vld [vmem:[#allocation5 + $0x2c] sm:$0xf]
        %v364 = vld [vmem:[#allocation5 + $0x30] sm:$0xf]
        %v365 = vld [vmem:[#allocation5 + $0x34] sm:$0xf]
        %v366 = vld [vmem:[#allocation5 + $0x38] sm:$0xf]
        %v367 = vld [vmem:[#allocation5 + $0x3c] sm:$0xf]
        %v368 = vld [vmem:[%s331] sm:$0x1]
        %v370 = vperm.slane %v368, 0
        %v388 = vunpack.c.l.b16 %v336
        %v389 = vunpack.c.l.b16 %v337
        %v390 = vunpack.c.l.b16 %v338
        %v391 = vunpack.c.l.b16 %v339
        %v392 = vunpack.c.l.b16 %v340
        %v393 = vunpack.c.l.b16 %v341
        %v394 = vunpack.c.l.b16 %v342
        %v395 = vunpack.c.l.b16 %v343
        %v396 = vunpack.c.l.b16 %v344
        %v397 = vunpack.c.l.b16 %v345
        %v398 = vunpack.c.l.b16 %v346
        %v399 = vunpack.c.l.b16 %v347
        %v400 = vunpack.c.l.b16 %v348
        %v401 = vunpack.c.l.b16 %v349
        %v402 = vunpack.c.l.b16 %v350
        %v403 = vunpack.c.l.b16 %v351
        %v404 = vpack.c.b16 %v389, %v388
        %v405 = vpack.c.b16 %v391, %v390
        %v406 = vpack.c.b16 %v393, %v392
        %v407 = vpack.c.b16 %v395, %v394
        %v408 = vpack.c.b16 %v397, %v396
        %v409 = vpack.c.b16 %v399, %v398
        %v410 = vpack.c.b16 %v401, %v400
        %v411 = vpack.c.b16 %v403, %v402
        %v436 = vunpack.c.l.b16 %v352
        %v437 = vunpack.c.l.b16 %v353
        %v438 = vunpack.c.l.b16 %v354
        %v439 = vunpack.c.l.b16 %v355
        %v440 = vunpack.c.l.b16 %v356
        %v441 = vunpack.c.l.b16 %v357
        %v442 = vunpack.c.l.b16 %v358
        %v443 = vunpack.c.l.b16 %v359
        %v444 = vunpack.c.l.b16 %v360
        %v445 = vunpack.c.l.b16 %v361
        %v446 = vunpack.c.l.b16 %v362
        %v447 = vunpack.c.l.b16 %v363
        %v448 = vunpack.c.l.b16 %v364
        %v449 = vunpack.c.l.b16 %v365
        %v450 = vunpack.c.l.b16 %v366
        %v451 = vunpack.c.l.b16 %v367
        %v452 = vpack.c.b16 %v437, %v436
        %v453 = vpack.c.b16 %v439, %v438
        %v454 = vpack.c.b16 %v441, %v440
        %v455 = vpack.c.b16 %v443, %v442
        %v456 = vpack.c.b16 %v445, %v444
        %v457 = vpack.c.b16 %v447, %v446
        %v458 = vpack.c.b16 %v449, %v448
        %v459 = vpack.c.b16 %v451, %v450
        %468 = vmatpush.bf16.msra.mxu0 %v459
        %469 = vmatpush.bf16.msra.mxu0 %v458
        %470 = vmatpush.bf16.msra.mxu0 %v457
        %471 = vmatpush.bf16.msra.mxu0 %v456
        %472 = vmatpush.bf16.msra.mxu0 %v455
        %473 = vmatpush.bf16.msra.mxu0 %v454
        %474 = vmatpush.bf16.msra.mxu0 %v453
        %475 = vmatpush.bf16.msra.mxu0 %v452
        %476 = vmatmul.bf16.gmra.mxu0 %v404
        %v477 = vpop.f32.mrf.mxu0
        %v478 = vadd.f32 %v370, %v477
        %v479 = vpop.f32.mrf.mxu0
        %v480 = vadd.f32 %v370, %v479
        %481 = vmatmul.bf16.gmra.mxu0 %v405
        %v482 = vpop.f32.mrf.mxu0
        %v483 = vadd.f32 %v370, %v482
        %v484 = vpop.f32.mrf.mxu0
        %v485 = vadd.f32 %v370, %v484
        %486 = vmatmul.bf16.gmra.mxu0 %v406
        %v487 = vpop.f32.mrf.mxu0
        %v488 = vadd.f32 %v370, %v487
        %v489 = vpop.f32.mrf.mxu0
        %v490 = vadd.f32 %v370, %v489
        %491 = vmatmul.bf16.gmra.mxu0 %v407
        %v492 = vpop.f32.mrf.mxu0
        %v493 = vadd.f32 %v370, %v492
        %v494 = vpop.f32.mrf.mxu0
        %v495 = vadd.f32 %v370, %v494
        %496 = vmatmul.bf16.gmra.mxu0 %v408
        %v497 = vpop.f32.mrf.mxu0
        %v498 = vadd.f32 %v370, %v497
        %v499 = vpop.f32.mrf.mxu0
        %v500 = vadd.f32 %v370, %v499
        %501 = vmatmul.bf16.gmra.mxu0 %v409
        %v502 = vpop.f32.mrf.mxu0
        %v503 = vadd.f32 %v370, %v502
        %v504 = vpop.f32.mrf.mxu0
        %v505 = vadd.f32 %v370, %v504
        %506 = vmatmul.bf16.gmra.mxu0 %v410
        %v507 = vpop.f32.mrf.mxu0
        %v508 = vadd.f32 %v370, %v507
        %v509 = vpop.f32.mrf.mxu0
        %v510 = vadd.f32 %v370, %v509
        %511 = vmatmul.bf16.gmra.mxu0 %v411
        %v512 = vpop.f32.mrf.mxu0
        %v513 = vadd.f32 %v370, %v512
        %v514 = vpop.f32.mrf.mxu0
        %v515 = vadd.f32 %v370, %v514
        %516 = vdwg.mxu0
        %v517 = vld [vmem:[#allocation7] sm:$0xf]
        %v518 = vld [vmem:[#allocation7 + $0x4] sm:$0xf]
        %v519 = vld [vmem:[#allocation7 + $0x8] sm:$0xf]
        %v520 = vld [vmem:[#allocation7 + $0xc] sm:$0xf]
        %v521 = vld [vmem:[#allocation7 + $0x10] sm:$0xf]
        %v522 = vld [vmem:[#allocation7 + $0x14] sm:$0xf]
        %v523 = vld [vmem:[#allocation7 + $0x18] sm:$0xf]
        %v524 = vld [vmem:[#allocation7 + $0x1c] sm:$0xf]
        %v525 = vld [vmem:[#allocation7 + $0x20] sm:$0xf]
        %v526 = vld [vmem:[#allocation7 + $0x24] sm:$0xf]
        %v527 = vld [vmem:[#allocation7 + $0x28] sm:$0xf]
        %v528 = vld [vmem:[#allocation7 + $0x2c] sm:$0xf]
        %v529 = vld [vmem:[#allocation7 + $0x30] sm:$0xf]
        %v530 = vld [vmem:[#allocation7 + $0x34] sm:$0xf]
        %v531 = vld [vmem:[#allocation7 + $0x38] sm:$0xf]
        %v532 = vld [vmem:[#allocation7 + $0x3c] sm:$0xf]
        %v533 = vld [vmem:[%s334] sm:$0x1]
        %v535 = vperm.slane %v533, 0
        %v553 = vunpack.c.l.b16 %v517
        %v554 = vunpack.c.l.b16 %v518
        %v555 = vunpack.c.l.b16 %v519
        %v556 = vunpack.c.l.b16 %v520
        %v557 = vunpack.c.l.b16 %v521
        %v558 = vunpack.c.l.b16 %v522
        %v559 = vunpack.c.l.b16 %v523
        %v560 = vunpack.c.l.b16 %v524
        %v561 = vunpack.c.l.b16 %v525
        %v562 = vunpack.c.l.b16 %v526
        %v563 = vunpack.c.l.b16 %v527
        %v564 = vunpack.c.l.b16 %v528
        %v565 = vunpack.c.l.b16 %v529
        %v566 = vunpack.c.l.b16 %v530
        %v567 = vunpack.c.l.b16 %v531
        %v568 = vunpack.c.l.b16 %v532
        %v569 = vpack.c.b16 %v554, %v553
        %v570 = vpack.c.b16 %v556, %v555
        %v571 = vpack.c.b16 %v558, %v557
        %v572 = vpack.c.b16 %v560, %v559
        %v573 = vpack.c.b16 %v562, %v561
        %v574 = vpack.c.b16 %v564, %v563
        %v575 = vpack.c.b16 %v566, %v565
        %v576 = vpack.c.b16 %v568, %v567
        %585 = vmatpush.bf16.msra.mxu0 %v576
        %586 = vmatpush.bf16.msra.mxu0 %v575
        %587 = vmatpush.bf16.msra.mxu0 %v574
        %588 = vmatpush.bf16.msra.mxu0 %v573
        %589 = vmatpush.bf16.msra.mxu0 %v572
        %590 = vmatpush.bf16.msra.mxu0 %v571
        %591 = vmatpush.bf16.msra.mxu0 %v570
        %592 = vmatpush.bf16.msra.mxu0 %v569
        %593 = vmatmul.bf16.gmra.mxu0 %v404
        %v594 = vpop.f32.mrf.mxu0
        %v595 = vadd.f32 %v535, %v594
        %v596 = vpop.f32.mrf.mxu0
        %v597 = vadd.f32 %v535, %v596
        %598 = vmatmul.bf16.gmra.mxu0 %v405
        %v599 = vpop.f32.mrf.mxu0
        %v600 = vadd.f32 %v535, %v599
        %v601 = vpop.f32.mrf.mxu0
        %v602 = vadd.f32 %v535, %v601
        %603 = vmatmul.bf16.gmra.mxu0 %v406
        %v604 = vpop.f32.mrf.mxu0
        %v605 = vadd.f32 %v535, %v604
        %v606 = vpop.f32.mrf.mxu0
        %v607 = vadd.f32 %v535, %v606
        %608 = vmatmul.bf16.gmra.mxu0 %v407
        %v609 = vpop.f32.mrf.mxu0
        %v610 = vadd.f32 %v535, %v609
        %v611 = vpop.f32.mrf.mxu0
        %v612 = vadd.f32 %v535, %v611
        %613 = vmatmul.bf16.gmra.mxu0 %v408
        %v614 = vpop.f32.mrf.mxu0
        %v615 = vadd.f32 %v535, %v614
        %v616 = vpop.f32.mrf.mxu0
        %v617 = vadd.f32 %v535, %v616
        %618 = vmatmul.bf16.gmra.mxu0 %v409
        %v619 = vpop.f32.mrf.mxu0
        %v620 = vadd.f32 %v535, %v619
        %v621 = vpop.f32.mrf.mxu0
        %v622 = vadd.f32 %v535, %v621
        %623 = vmatmul.bf16.gmra.mxu0 %v410
        %v624 = vpop.f32.mrf.mxu0
        %v625 = vadd.f32 %v535, %v624
        %v626 = vpop.f32.mrf.mxu0
        %v627 = vadd.f32 %v535, %v626
        %628 = vmatmul.bf16.gmra.mxu0 %v411
        %v629 = vpop.f32.mrf.mxu0
        %v630 = vadd.f32 %v535, %v629
        %v631 = vpop.f32.mrf.mxu0
        %v632 = vadd.f32 %v535, %v631
        %633 = vdwg.mxu0
        %v634 = vmul.f32 %v478, %v595
        %v635 = vmul.f32 %v480, %v597
        %v636 = vmul.f32 %v483, %v600
        %v637 = vmul.f32 %v485, %v602
        %v638 = vmul.f32 %v488, %v605
        %v639 = vmul.f32 %v490, %v607
        %v640 = vmul.f32 %v493, %v610
        %v641 = vmul.f32 %v495, %v612
        %v642 = vmul.f32 %v498, %v615
        %v643 = vmul.f32 %v500, %v617
        %v644 = vmul.f32 %v503, %v620
        %v645 = vmul.f32 %v505, %v622
        %v646 = vmul.f32 %v508, %v625
        %v647 = vmul.f32 %v510, %v627
        %v648 = vmul.f32 %v513, %v630
        %v649 = vmul.f32 %v515, %v632
        %vm650 = vcmp.lt.f32.partialorder %v595, 0.0
        %vm651 = vcmp.lt.f32.partialorder %v597, 0.0
        %vm652 = vcmp.lt.f32.partialorder %v600, 0.0
        %vm653 = vcmp.lt.f32.partialorder %v602, 0.0
        %vm654 = vcmp.lt.f32.partialorder %v605, 0.0
        %vm655 = vcmp.lt.f32.partialorder %v607, 0.0
        %vm656 = vcmp.lt.f32.partialorder %v610, 0.0
        %vm657 = vcmp.lt.f32.partialorder %v612, 0.0
        %vm658 = vcmp.lt.f32.partialorder %v615, 0.0
        %vm659 = vcmp.lt.f32.partialorder %v617, 0.0
        %vm660 = vcmp.lt.f32.partialorder %v620, 0.0
        %vm661 = vcmp.lt.f32.partialorder %v622, 0.0
        %vm662 = vcmp.lt.f32.partialorder %v625, 0.0
        %vm663 = vcmp.lt.f32.partialorder %v627, 0.0
        %vm664 = vcmp.lt.f32.partialorder %v630, 0.0
        %vm665 = vcmp.lt.f32.partialorder %v632, 0.0
        %v666 = vsel %vm650, -1.0, 1.0
        %v667 = vsel %vm651, -1.0, 1.0
        %v668 = vsel %vm652, -1.0, 1.0
        %v669 = vsel %vm653, -1.0, 1.0
        %v670 = vsel %vm654, -1.0, 1.0
        %v671 = vsel %vm655, -1.0, 1.0
        %v672 = vsel %vm656, -1.0, 1.0
        %v673 = vsel %vm657, -1.0, 1.0
        %v674 = vsel %vm658, -1.0, 1.0
        %v675 = vsel %vm659, -1.0, 1.0
        %v676 = vsel %vm660, -1.0, 1.0
        %v677 = vsel %vm661, -1.0, 1.0
        %v678 = vsel %vm662, -1.0, 1.0
        %v679 = vsel %vm663, -1.0, 1.0
        %v680 = vsel %vm664, -1.0, 1.0
        %v681 = vsel %vm665, -1.0, 1.0
        %v682 = vmul.f32 %v595, %v666
        %v683 = vmul.f32 %v597, %v667
        %v684 = vmul.f32 %v600, %v668
        %v685 = vmul.f32 %v602, %v669
        %v686 = vmul.f32 %v605, %v670
        %v687 = vmul.f32 %v607, %v671
        %v688 = vmul.f32 %v610, %v672
        %v689 = vmul.f32 %v612, %v673
        %v690 = vmul.f32 %v615, %v674
        %v691 = vmul.f32 %v617, %v675
        %v692 = vmul.f32 %v620, %v676
        %v693 = vmul.f32 %v622, %v677
        %v694 = vmul.f32 %v625, %v678
        %v695 = vmul.f32 %v627, %v679
        %v696 = vmul.f32 %v630, %v680
        %v697 = vmul.f32 %v632, %v681
        %v698 = vmul.f32 %v682, 0.3275911
        %v699 = vmul.f32 %v683, 0.3275911
        %v700 = vmul.f32 %v684, 0.3275911
        %v701 = vmul.f32 %v685, 0.3275911
        %v702 = vmul.f32 %v686, 0.3275911
        %v703 = vmul.f32 %v687, 0.3275911
        %v704 = vmul.f32 %v688, 0.3275911
        %v705 = vmul.f32 %v689, 0.3275911
        %v706 = vmul.f32 %v690, 0.3275911
        %v707 = vmul.f32 %v691, 0.3275911
        %v708 = vmul.f32 %v692, 0.3275911
        %v709 = vmul.f32 %v693, 0.3275911
        %v710 = vmul.f32 %v694, 0.3275911
        %v711 = vmul.f32 %v695, 0.3275911
        %v712 = vmul.f32 %v696, 0.3275911
        %v713 = vmul.f32 %v697, 0.3275911
        %v714 = vadd.f32 %v698, 1.0
        %v715 = vadd.f32 %v699, 1.0
        %v716 = vadd.f32 %v700, 1.0
        %v717 = vadd.f32 %v701, 1.0
        %v718 = vadd.f32 %v702, 1.0
        %v719 = vadd.f32 %v703, 1.0
        %v720 = vadd.f32 %v704, 1.0
        %v721 = vadd.f32 %v705, 1.0
        %v722 = vadd.f32 %v706, 1.0
        %v723 = vadd.f32 %v707, 1.0
        %v724 = vadd.f32 %v708, 1.0
        %v725 = vadd.f32 %v709, 1.0
        %v726 = vadd.f32 %v710, 1.0
        %v727 = vadd.f32 %v711, 1.0
        %v728 = vadd.f32 %v712, 1.0
        %v729 = vadd.f32 %v713, 1.0
        %v730 = vrcp.pop %v714
        %v731 = vrcp.pop %v715
        %v732 = vrcp.pop %v716
        %v733 = vrcp.pop %v717
        %v734 = vrcp.pop %v718
        %v735 = vrcp.pop %v719
        %v736 = vrcp.pop %v720
        %v737 = vrcp.pop %v721
        %v738 = vrcp.pop %v722
        %v739 = vrcp.pop %v723
        %v740 = vrcp.pop %v724
        %v741 = vrcp.pop %v725
        %v742 = vrcp.pop %v726
        %v743 = vrcp.pop %v727
        %v744 = vrcp.pop %v728
        %v745 = vrcp.pop %v729
        %v746 = vmul.f32 %v730, 1.0614054
        %v747 = vmul.f32 %v731, 1.0614054
        %v748 = vmul.f32 %v732, 1.0614054
        %v749 = vmul.f32 %v733, 1.0614054
        %v750 = vmul.f32 %v734, 1.0614054
        %v751 = vmul.f32 %v735, 1.0614054
        %v752 = vmul.f32 %v736, 1.0614054
        %v753 = vmul.f32 %v737, 1.0614054
        %v754 = vmul.f32 %v738, 1.0614054
        %v755 = vmul.f32 %v739, 1.0614054
        %v756 = vmul.f32 %v740, 1.0614054
        %v757 = vmul.f32 %v741, 1.0614054
        %v758 = vmul.f32 %v742, 1.0614054
        %v759 = vmul.f32 %v743, 1.0614054
        %v760 = vmul.f32 %v744, 1.0614054
        %v761 = vmul.f32 %v745, 1.0614054
        %v762 = vadd.f32 %v746, -1.4531521
        %v763 = vadd.f32 %v747, -1.4531521
        %v764 = vadd.f32 %v748, -1.4531521
        %v765 = vadd.f32 %v749, -1.4531521
        %v766 = vadd.f32 %v750, -1.4531521
        %v767 = vadd.f32 %v751, -1.4531521
        %v768 = vadd.f32 %v752, -1.4531521
        %v769 = vadd.f32 %v753, -1.4531521
        %v770 = vadd.f32 %v754, -1.4531521
        %v771 = vadd.f32 %v755, -1.4531521
        %v772 = vadd.f32 %v756, -1.4531521
        %v773 = vadd.f32 %v757, -1.4531521
        %v774 = vadd.f32 %v758, -1.4531521
        %v775 = vadd.f32 %v759, -1.4531521
        %v776 = vadd.f32 %v760, -1.4531521
        %v777 = vadd.f32 %v761, -1.4531521
        %v778 = vmul.f32 %v730, %v762
        %v779 = vmul.f32 %v731, %v763
        %v780 = vmul.f32 %v732, %v764
        %v781 = vmul.f32 %v733, %v765
        %v782 = vmul.f32 %v734, %v766
        %v783 = vmul.f32 %v735, %v767
        %v784 = vmul.f32 %v736, %v768
        %v785 = vmul.f32 %v737, %v769
        %v786 = vmul.f32 %v738, %v770
        %v787 = vmul.f32 %v739, %v771
        %v788 = vmul.f32 %v740, %v772
        %v789 = vmul.f32 %v741, %v773
        %v790 = vmul.f32 %v742, %v774
        %v791 = vmul.f32 %v743, %v775
        %v792 = vmul.f32 %v744, %v776
        %v793 = vmul.f32 %v745, %v777
        %v794 = vadd.f32 %v778, 1.4214138
        %v795 = vadd.f32 %v779, 1.4214138
        %v796 = vadd.f32 %v780, 1.4214138
        %v797 = vadd.f32 %v781, 1.4214138
        %v798 = vadd.f32 %v782, 1.4214138
        %v799 = vadd.f32 %v783, 1.4214138
        %v800 = vadd.f32 %v784, 1.4214138
        %v801 = vadd.f32 %v785, 1.4214138
        %v802 = vadd.f32 %v786, 1.4214138
        %v803 = vadd.f32 %v787, 1.4214138
        %v804 = vadd.f32 %v788, 1.4214138
        %v805 = vadd.f32 %v789, 1.4214138
        %v806 = vadd.f32 %v790, 1.4214138
        %v807 = vadd.f32 %v791, 1.4214138
        %v808 = vadd.f32 %v792, 1.4214138
        %v809 = vadd.f32 %v793, 1.4214138
        %v810 = vmul.f32 %v730, %v794
        %v811 = vmul.f32 %v731, %v795
        %v812 = vmul.f32 %v732, %v796
        %v813 = vmul.f32 %v733, %v797
        %v814 = vmul.f32 %v734, %v798
        %v815 = vmul.f32 %v735, %v799
        %v816 = vmul.f32 %v736, %v800
        %v817 = vmul.f32 %v737, %v801
        %v818 = vmul.f32 %v738, %v802
        %v819 = vmul.f32 %v739, %v803
        %v820 = vmul.f32 %v740, %v804
        %v821 = vmul.f32 %v741, %v805
        %v822 = vmul.f32 %v742, %v806
        %v823 = vmul.f32 %v743, %v807
        %v824 = vmul.f32 %v744, %v808
        %v825 = vmul.f32 %v745, %v809
        %v826 = vadd.f32 %v810, -0.28449672
        %v827 = vadd.f32 %v811, -0.28449672
        %v828 = vadd.f32 %v812, -0.28449672
        %v829 = vadd.f32 %v813, -0.28449672
        %v830 = vadd.f32 %v814, -0.28449672
        %v831 = vadd.f32 %v815, -0.28449672
        %v832 = vadd.f32 %v816, -0.28449672
        %v833 = vadd.f32 %v817, -0.28449672
        %v834 = vadd.f32 %v818, -0.28449672
        %v835 = vadd.f32 %v819, -0.28449672
        %v836 = vadd.f32 %v820, -0.28449672
        %v837 = vadd.f32 %v821, -0.28449672
        %v838 = vadd.f32 %v822, -0.28449672
        %v839 = vadd.f32 %v823, -0.28449672
        %v840 = vadd.f32 %v824, -0.28449672
        %v841 = vadd.f32 %v825, -0.28449672
        %v842 = vmul.f32 %v730, %v826
        %v843 = vmul.f32 %v731, %v827
        %v844 = vmul.f32 %v732, %v828
        %v845 = vmul.f32 %v733, %v829
        %v846 = vmul.f32 %v734, %v830
        %v847 = vmul.f32 %v735, %v831
        %v848 = vmul.f32 %v736, %v832
        %v849 = vmul.f32 %v737, %v833
        %v850 = vmul.f32 %v738, %v834
        %v851 = vmul.f32 %v739, %v835
        %v852 = vmul.f32 %v740, %v836
        %v853 = vmul.f32 %v741, %v837
        %v854 = vmul.f32 %v742, %v838
        %v855 = vmul.f32 %v743, %v839
        %v856 = vmul.f32 %v744, %v840
        %v857 = vmul.f32 %v745, %v841
        %v858 = vadd.f32 %v842, 0.2548296
        %v859 = vadd.f32 %v843, 0.2548296
        %v860 = vadd.f32 %v844, 0.2548296
        %v861 = vadd.f32 %v845, 0.2548296
        %v862 = vadd.f32 %v846, 0.2548296
        %v863 = vadd.f32 %v847, 0.2548296
        %v864 = vadd.f32 %v848, 0.2548296
        %v865 = vadd.f32 %v849, 0.2548296
        %v866 = vadd.f32 %v850, 0.2548296
        %v867 = vadd.f32 %v851, 0.2548296
        %v868 = vadd.f32 %v852, 0.2548296
        %v869 = vadd.f32 %v853, 0.2548296
        %v870 = vadd.f32 %v854, 0.2548296
        %v871 = vadd.f32 %v855, 0.2548296
        %v872 = vadd.f32 %v856, 0.2548296
        %v873 = vadd.f32 %v857, 0.2548296
        %v874 = vmul.f32 %v730, %v858
        %v875 = vmul.f32 %v731, %v859
        %v876 = vmul.f32 %v732, %v860
        %v877 = vmul.f32 %v733, %v861
        %v878 = vmul.f32 %v734, %v862
        %v879 = vmul.f32 %v735, %v863
        %v880 = vmul.f32 %v736, %v864
        %v881 = vmul.f32 %v737, %v865
        %v882 = vmul.f32 %v738, %v866
        %v883 = vmul.f32 %v739, %v867
        %v884 = vmul.f32 %v740, %v868
        %v885 = vmul.f32 %v741, %v869
        %v886 = vmul.f32 %v742, %v870
        %v887 = vmul.f32 %v743, %v871
        %v888 = vmul.f32 %v744, %v872
        %v889 = vmul.f32 %v745, %v873
        %v890 = vmul.f32 %v682, %v682
        %v891 = vmul.f32 %v683, %v683
        %v892 = vmul.f32 %v684, %v684
        %v893 = vmul.f32 %v685, %v685
        %v894 = vmul.f32 %v686, %v686
        %v895 = vmul.f32 %v687, %v687
        %v896 = vmul.f32 %v688, %v688
        %v897 = vmul.f32 %v689, %v689
        %v898 = vmul.f32 %v690, %v690
        %v899 = vmul.f32 %v691, %v691
        %v900 = vmul.f32 %v692, %v692
        %v901 = vmul.f32 %v693, %v693
        %v902 = vmul.f32 %v694, %v694
        %v903 = vmul.f32 %v695, %v695
        %v904 = vmul.f32 %v696, %v696
        %v905 = vmul.f32 %v697, %v697
        %v906 = vsub.f32 0.0, %v890
        %v907 = vsub.f32 0.0, %v891
        %v908 = vsub.f32 0.0, %v892
        %v909 = vsub.f32 0.0, %v893
        %v910 = vsub.f32 0.0, %v894
        %v911 = vsub.f32 0.0, %v895
        %v912 = vsub.f32 0.0, %v896
        %v913 = vsub.f32 0.0, %v897
        %v914 = vsub.f32 0.0, %v898
        %v915 = vsub.f32 0.0, %v899
        %v916 = vsub.f32 0.0, %v900
        %v917 = vsub.f32 0.0, %v901
        %v918 = vsub.f32 0.0, %v902
        %v919 = vsub.f32 0.0, %v903
        %v920 = vsub.f32 0.0, %v904
        %v921 = vsub.f32 0.0, %v905
        %v922 = vmul.f32 %v906, 1.442695
        %v923 = vpow.pop %v922
        %v924 = vmul.f32 %v907, 1.442695
        %v925 = vpow.pop %v924
        %v926 = vmul.f32 %v908, 1.442695
        %v927 = vpow.pop %v926
        %v928 = vmul.f32 %v909, 1.442695
        %v929 = vpow.pop %v928
        %v930 = vmul.f32 %v910, 1.442695
        %v931 = vpow.pop %v930
        %v932 = vmul.f32 %v911, 1.442695
        %v933 = vpow.pop %v932
        %v934 = vmul.f32 %v912, 1.442695
        %v935 = vpow.pop %v934
        %v936 = vmul.f32 %v913, 1.442695
        %v937 = vpow.pop %v936
        %v938 = vmul.f32 %v914, 1.442695
        %v939 = vpow.pop %v938
        %v940 = vmul.f32 %v915, 1.442695
        %v941 = vpow.pop %v940
        %v942 = vmul.f32 %v916, 1.442695
        %v943 = vpow.pop %v942
        %v944 = vmul.f32 %v917, 1.442695
        %v945 = vpow.pop %v944
        %v946 = vmul.f32 %v918, 1.442695
        %v947 = vpow.pop %v946
        %v948 = vmul.f32 %v919, 1.442695
        %v949 = vpow.pop %v948
        %v950 = vmul.f32 %v920, 1.442695
        %v951 = vpow.pop %v950
        %v952 = vmul.f32 %v921, 1.442695
        %v953 = vpow.pop %v952
        %v954 = vmul.f32 %v874, %v923
        %v955 = vmul.f32 %v875, %v925
        %v956 = vmul.f32 %v876, %v927
        %v957 = vmul.f32 %v877, %v929
        %v958 = vmul.f32 %v878, %v931
        %v959 = vmul.f32 %v879, %v933
        %v960 = vmul.f32 %v880, %v935
        %v961 = vmul.f32 %v881, %v937
        %v962 = vmul.f32 %v882, %v939
        %v963 = vmul.f32 %v883, %v941
        %v964 = vmul.f32 %v884, %v943
        %v965 = vmul.f32 %v885, %v945
        %v966 = vmul.f32 %v886, %v947
        %v967 = vmul.f32 %v887, %v949
        %v968 = vmul.f32 %v888, %v951
        %v969 = vmul.f32 %v889, %v953
        %v970 = vsub.f32 1.0, %v954
        %v971 = vsub.f32 1.0, %v955
        %v972 = vsub.f32 1.0, %v956
        %v973 = vsub.f32 1.0, %v957
        %v974 = vsub.f32 1.0, %v958
        %v975 = vsub.f32 1.0, %v959
        %v976 = vsub.f32 1.0, %v960
        %v977 = vsub.f32 1.0, %v961
        %v978 = vsub.f32 1.0, %v962
        %v979 = vsub.f32 1.0, %v963
        %v980 = vsub.f32 1.0, %v964
        %v981 = vsub.f32 1.0, %v965
        %v982 = vsub.f32 1.0, %v966
        %v983 = vsub.f32 1.0, %v967
        %v984 = vsub.f32 1.0, %v968
        %v985 = vsub.f32 1.0, %v969
        %v986 = vmul.f32 %v666, %v970
        %v987 = vmul.f32 %v667, %v971
        %v988 = vmul.f32 %v668, %v972
        %v989 = vmul.f32 %v669, %v973
        %v990 = vmul.f32 %v670, %v974
        %v991 = vmul.f32 %v671, %v975
        %v992 = vmul.f32 %v672, %v976
        %v993 = vmul.f32 %v673, %v977
        %v994 = vmul.f32 %v674, %v978
        %v995 = vmul.f32 %v675, %v979
        %v996 = vmul.f32 %v676, %v980
        %v997 = vmul.f32 %v677, %v981
        %v998 = vmul.f32 %v678, %v982
        %v999 = vmul.f32 %v679, %v983
        %v1000 = vmul.f32 %v680, %v984
        %v1001 = vmul.f32 %v681, %v985
        %v1002 = vadd.f32 %v986, 1.0
        %v1003 = vadd.f32 %v987, 1.0
        %v1004 = vadd.f32 %v988, 1.0
        %v1005 = vadd.f32 %v989, 1.0
        %v1006 = vadd.f32 %v990, 1.0
        %v1007 = vadd.f32 %v991, 1.0
        %v1008 = vadd.f32 %v992, 1.0
        %v1009 = vadd.f32 %v993, 1.0
        %v1010 = vadd.f32 %v994, 1.0
        %v1011 = vadd.f32 %v995, 1.0
        %v1012 = vadd.f32 %v996, 1.0
        %v1013 = vadd.f32 %v997, 1.0
        %v1014 = vadd.f32 %v998, 1.0
        %v1015 = vadd.f32 %v999, 1.0
        %v1016 = vadd.f32 %v1000, 1.0
        %v1017 = vadd.f32 %v1001, 1.0
        %v1018 = vmul.f32 %v634, %v1002
        %v1019 = vmul.f32 %v635, %v1003
        %v1020 = vmul.f32 %v636, %v1004
        %v1021 = vmul.f32 %v637, %v1005
        %v1022 = vmul.f32 %v638, %v1006
        %v1023 = vmul.f32 %v639, %v1007
        %v1024 = vmul.f32 %v640, %v1008
        %v1025 = vmul.f32 %v641, %v1009
        %v1026 = vmul.f32 %v642, %v1010
        %v1027 = vmul.f32 %v643, %v1011
        %v1028 = vmul.f32 %v644, %v1012
        %v1029 = vmul.f32 %v645, %v1013
        %v1030 = vmul.f32 %v646, %v1014
        %v1031 = vmul.f32 %v647, %v1015
        %v1032 = vmul.f32 %v648, %v1016
        %v1033 = vmul.f32 %v649, %v1017
        %1034 = vst [vmem:[%s327] sm:$0xff] %v1018
        %1035 = vst [vmem:[%s327 + $0x8] sm:$0xff] %v1019
        %1036 = vst [vmem:[%s327 + $0x10] sm:$0xff] %v1020
        %1037 = vst [vmem:[%s327 + $0x18] sm:$0xff] %v1021
        %1038 = vst [vmem:[%s327 + $0x20] sm:$0xff] %v1022
        %1039 = vst [vmem:[%s327 + $0x28] sm:$0xff] %v1023
        %1040 = vst [vmem:[%s327 + $0x30] sm:$0xff] %v1024
        %1041 = vst [vmem:[%s327 + $0x38] sm:$0xff] %v1025
        %1042 = vst [vmem:[%s327 + $0x40] sm:$0xff] %v1026
        %1043 = vst [vmem:[%s327 + $0x48] sm:$0xff] %v1027
        %1044 = vst [vmem:[%s327 + $0x50] sm:$0xff] %v1028
        %1045 = vst [vmem:[%s327 + $0x58] sm:$0xff] %v1029
        %1046 = vst [vmem:[%s327 + $0x60] sm:$0xff] %v1030
        %1047 = vst [vmem:[%s327 + $0x68] sm:$0xff] %v1031
        %1048 = vst [vmem:[%s327 + $0x70] sm:$0xff] %v1032
        %1049 = vst [vmem:[%s327 + $0x78] sm:$0xff] %v1033
        %s1050 = sand.u32 %s175, 1
        %s1051 = scalar_lea.sflag [#allocation4], %s1050
        %s1052 = sand.u32 %s175, 1
        %s1053 = smul.addr %s1052, 128
        %s1054 = scalar_lea.vmem [#allocation8], %s1053
        // Predicated region
        $region53: #{tpu_custom_call.1} parent=39 // pred_check
          %p1055 = pneg %p185
        $region54: #{tpu_custom_call.1} parent=39 // pred_check_branch
          %1057 = sbr.rel (%p1055) target = $region56
        $region55: #{tpu_custom_call.1} parent=39 // pred_region
          %s1058 = smul.u32 16, %s27
          %1060 = vsyncadd %s1051, 0
          %s1061 = sadd.s32 %s28, %s1058
          %s1062 = smul.addr %s1061, 8
          %s1063 = scalar_lea.hbm %s5, %s1062
          %s1064 = sshll.u32 %s1054, 4
          %s1065 = int_to_ptr.vmem [resolvable:$true] %s1064
          %s1066 = sshll.u32 %s1063, 4
          %s1067 = int_to_ptr.hbm [resolvable:$true] %s1066
          %1072 = dma.vmem_to_hbm [thread:$0]  %s1065, 2048, %s1067, %s1051, 128, 128, 8
        $region56: #{tpu_custom_call.1} parent=39 // pred_fallthru
          _
      $region40: #{tpu_custom_call.1} parent=5 // pred_fallthru
        _
      %p1073 = scmp.le.s32.totalorder 2, %s18
      // Predicated region
      $region57: #{tpu_custom_call.1} parent=5 // pred_check
        %p1074 = pneg %p1073
      $region58: #{tpu_custom_call.1} parent=5 // pred_check_branch
        %1076 = sbr.rel (%p1074) target = $region60
      $region59: #{tpu_custom_call.1} parent=5 // pred_region
        %s1077 = ssub.s32 %s18, 2
        // Predicated region
        $region61: #{tpu_custom_call.1} parent=59 // pred_check
          %p1078 = pneg %p191
        $region62: #{tpu_custom_call.1} parent=59 // pred_check_branch
          %1080 = sbr.rel (%p1078) target = $region64
        $region63: #{tpu_custom_call.1} parent=59 // pred_region
          %s1081 = sand.u32 %s176, 1
          %s1082 = scalar_lea.sflag [#allocation4], %s1081
          %s1083 = sand.u32 %s176, 1
          %s1084 = smul.addr %s1083, 128
          %s1085 = scalar_lea.vmem [#allocation8], %s1084
          %1087 = dma.done %s1082, 2048
        $region64: #{tpu_custom_call.1} parent=59 // pred_fallthru
          _
      $region60: #{tpu_custom_call.1} parent=5 // pred_fallthru
        _
    $region6: #{tpu_custom_call.1} parent=1 // loop_footer
      %s22 = sadd.s32 1, %s18
    $region7: #{tpu_custom_call.1} parent=1 // loop_footer_branch
      %17 = sbr.rel target = $region3
    $region8: #{tpu_custom_call.1} parent=1 // loop_exit
      _
    %1088 = vsyncpa [#allocation3], 1
    %s1089 = scalar_lea.sflag [#allocation3], 1
    %1090 = vsyncpa %s1089, 1
    %1091 = vsyncpa [#allocation6], 1
    %1092 = vsyncpa [#allocation4], 1
    %s1093 = scalar_lea.sflag [#allocation4], 1
    %1094 = vsyncpa %s1093, 1

</llo_original>
